<compile_context>
chip_gen: v6e
topology: v6e:2x2x1
jax: 0.10.0
libtpu: 0.0.40
codegen_flags: <defaults>
</compile_context>

<pallas_src>
import math
from functools import partial

import numpy as np
import jax
import jax.numpy as jnp
from jax import lax
from jax.experimental import pallas as pl
from jax.experimental.pallas import tpu as pltpu


def _penc_kernel(freq_ref, phase_ref, poscol_ref, o_ref, *, rows_to_pos):
    # o_ref block: (TR, L) lane-dense slab of the flattened (x, ch) encoding.
    # freq_ref / phase_ref / poscol_ref: (1, L) per-lane tables.
    TR, L = o_ref.shape
    r0 = pl.program_id(0) * TR                                   # absolute row offset
    row = lax.broadcasted_iota(jnp.int32, (TR, L), 0) + r0        # absolute flat-row index
    # flat index f = row * L + lane; position = f // ch
    #              = row * (L // ch) + (lane // ch)   (exact: L % ch == 0)
    pos = row.astype(jnp.float32) * np.float32(rows_to_pos) + poscol_ref[...]
    arg = pos * freq_ref[...] + phase_ref[...]                    # phase: 0 -> sin, pi/2 -> cos
    o_ref[...] = jnp.sin(arg).astype(o_ref.dtype)


def positional_encoding_1d(tensor, *, block_rows=None):
    """Forward pass of PositionalEncoding1D.

    Returns the encoding of shape (batch, x, ch) with dtype of `tensor`.
    `block_rows` (optional) forces the per-grid-step row-tile size (testing).
    """
    if tensor.ndim != 3:
        raise RuntimeError("The input tensor has to be 3d!")
    B, X, orig_ch = tensor.shape

    # --- parameter setup mirroring __init__ (deterministic, no checkpoint) ---
    channels = int(np.ceil(orig_ch / 2) * 2)
    inv_freq = (1.0 / (10000.0 ** (np.arange(0, channels, 2, dtype=np.float32)
                                   / np.float32(channels)))).astype(np.float32)

    # --- lane-dense flat layout ---
    # Flatten (X, orig_ch) row-major to length N and tile as (rows, L) with
    # L a multiple of both 128 (full lanes) and orig_ch (so the per-lane
    # channel index is a fixed (1, L) table).
    L = orig_ch * 128 // math.gcd(orig_ch, 128)
    N = X * orig_ch
    R_total = -(-N // L)                      # ceil-div
    rows_to_pos = L // orig_ch

    lane = np.arange(L)
    c_idx = lane % orig_ch
    freq_col = inv_freq[c_idx // 2].reshape(1, L).astype(np.float32)           # inv_freq[c//2]
    phase_col = ((c_idx % 2) * np.float32(np.pi / 2)).astype(np.float32).reshape(1, L)
    pos_col = (lane // orig_ch).astype(np.float32).reshape(1, L)               # lane's pos offset

    # --- row tiling: ~1-2 MiB f32 blocks, rows a multiple of 32 ---
    if block_rows is None:
        tr = max(32, min(2048, ((4 * 1024 * 1024) // (L * 4)) // 32 * 32))
    else:
        tr = int(block_rows)
    if tr >= R_total:
        tr = R_total                          # single full-extent block
    num_blocks = -(-R_total // tr)
    R_padded = num_blocks * tr                # pad rows so every block is full

    itemsize = np.dtype(tensor.dtype).itemsize
    out2d = pl.pallas_call(
        partial(_penc_kernel, rows_to_pos=rows_to_pos),
        out_shape=jax.ShapeDtypeStruct((R_padded, L), tensor.dtype),
        grid=(num_blocks,),
        in_specs=[
            pl.BlockSpec((1, L), lambda i: (0, 0)),
            pl.BlockSpec((1, L), lambda i: (0, 0)),
            pl.BlockSpec((1, L), lambda i: (0, 0)),
        ],
        out_specs=pl.BlockSpec((tr, L), lambda i: (i, 0)),
        compiler_params=pltpu.CompilerParams(
            dimension_semantics=("parallel",),
            vmem_limit_bytes=32 * 1024 * 1024,
        ),
        cost_estimate=pl.CostEstimate(
            flops=4 * R_padded * L,
            transcendentals=R_padded * L,
            bytes_accessed=R_padded * L * itemsize + 3 * L * 4,
        ),
    )(jnp.asarray(freq_col), jnp.asarray(phase_col), jnp.asarray(pos_col))

    # Free reshapes / cheap slice of the flat slab, then batch-broadcast once.
    enc = out2d.reshape(-1)[:N].reshape(X, orig_ch)
    return jnp.broadcast_to(enc[None], (B, X, orig_ch))


def _reference(tensor):
    """Pure-JAX reference matching the PyTorch forward exactly."""
    B, X, orig_ch = tensor.shape
    channels = int(np.ceil(orig_ch / 2) * 2)
    inv_freq = 1.0 / (10000.0 ** (jnp.arange(0, channels, 2, dtype=jnp.float32) / channels))
    pos_x = jnp.arange(X, dtype=jnp.float32)
    sin_inp = jnp.einsum("i,j->ij", pos_x, inv_freq)                  # (X, channels//2)
    emb_x = jnp.stack((jnp.sin(sin_inp), jnp.cos(sin_inp)), axis=-1)  # (X, channels//2, 2)
    emb_x = emb_x.reshape(X, channels)                                # interleaved sin/cos
    emb = emb_x[:, :orig_ch].astype(tensor.dtype)
    return jnp.broadcast_to(emb[None], (B, X, orig_ch))


if __name__ == "__main__":
    key = jax.random.PRNGKey(0)

    # Case 1: original small shape (single block, lane-dense L = 128).
    x1 = jax.random.normal(key, (2, 16, 8), dtype=jnp.float32)
    o1 = jax.block_until_ready(positional_encoding_1d(x1))
    np.testing.assert_allclose(np.asarray(o1), np.asarray(_reference(x1)), rtol=1e-5, atol=1e-5)
    assert o1.shape == x1.shape and o1.dtype == x1.dtype

    # Case 2: odd channel count (ch padded to even for inv_freq, tail dropped).
    x2 = jax.random.normal(key, (2, 16, 7), dtype=jnp.float32)
    o2 = jax.block_until_ready(positional_encoding_1d(x2))
    np.testing.assert_allclose(np.asarray(o2), np.asarray(_reference(x2)), rtol=1e-5, atol=1e-5)
    assert o2.shape == x2.shape and o2.dtype == x2.dtype

    # Case 3: multi-block grid path (forced small row tile -> grid of 4).
    x3 = jax.random.normal(key, (2, 32, 128), dtype=jnp.float32)
    o3 = jax.block_until_ready(positional_encoding_1d(x3, block_rows=8))
    np.testing.assert_allclose(np.asarray(o3), np.asarray(_reference(x3)), rtol=1e-5, atol=1e-5)
    assert o3.shape == x3.shape and o3.dtype == x3.dtype

    print("KERNEL_OK")
</pallas_src>

<mosaic_0001>
module attributes {stable_mosaic.version = 11 : i64} {
  func.func @_penc_kernel(%arg0: i32, %arg1: memref<1x128xf32, #tpu.memory_space<vmem>>, %arg2: memref<1x128xf32, #tpu.memory_space<vmem>>, %arg3: memref<1x128xf32, #tpu.memory_space<vmem>>, %arg4: memref<1x128xf32, #tpu.memory_space<vmem>>) attributes {dimension_semantics = [#tpu.dimension_semantics<parallel>], iteration_bounds = array<i64: 1>, scalar_prefetch = 0 : i64, scratch_operands = 0 : i64, tpu.core_type = #tpu.core_type<tc>, window_params = [{pipeline_mode = #tpu.pipeline_mode<synchronous>, transform_indices = @transform_0, window_bounds = array<i64: 1, 128>}, {pipeline_mode = #tpu.pipeline_mode<synchronous>, transform_indices = @transform_1, window_bounds = array<i64: 1, 128>}, {pipeline_mode = #tpu.pipeline_mode<synchronous>, transform_indices = @transform_2, window_bounds = array<i64: 1, 128>}, {transform_indices = @transform_3, window_bounds = array<i64: 1, 128>}]} {
    %c1_i32 = arith.constant 1 : i32
    %0 = arith.muli %arg0, %c1_i32 : i32
    %1 = tpu.iota {dimensions = array<i32: 0>} : vector<1x128xi32>
    %2 = vector.broadcast %0 : i32 to vector<1x128xi32>
    %3 = arith.addi %1, %2 : vector<1x128xi32>
    %4 = arith.sitofp %3 : vector<1x128xi32> to vector<1x128xf32>
    %cst = arith.constant 1.600000e+01 : f32
    %5 = vector.broadcast %cst : f32 to vector<1x128xf32>
    %6 = arith.mulf %4, %5 : vector<1x128xf32>
    %c0 = arith.constant 0 : index
    %c0_0 = arith.constant 0 : index
    %7 = vector.load %arg3[%c0, %c0_0] : memref<1x128xf32, #tpu.memory_space<vmem>>, vector<1x128xf32>
    %8 = arith.addf %6, %7 : vector<1x128xf32>
    %c0_1 = arith.constant 0 : index
    %c0_2 = arith.constant 0 : index
    %9 = vector.load %arg1[%c0_1, %c0_2] : memref<1x128xf32, #tpu.memory_space<vmem>>, vector<1x128xf32>
    %10 = arith.mulf %8, %9 : vector<1x128xf32>
    %c0_3 = arith.constant 0 : index
    %c0_4 = arith.constant 0 : index
    %11 = vector.load %arg2[%c0_3, %c0_4] : memref<1x128xf32, #tpu.memory_space<vmem>>, vector<1x128xf32>
    %12 = arith.addf %10, %11 : vector<1x128xf32>
    %13 = math.sin %12 : vector<1x128xf32>
    %c0_5 = arith.constant 0 : index
    %c0_6 = arith.constant 0 : index
    %14 = vector.load %arg4[%c0_5, %c0_6] : memref<1x128xf32, #tpu.memory_space<vmem>>, vector<1x128xf32>
    tpu.vector_store %arg4[%c0_5, %c0_6], %13 {strides = array<i32>} : memref<1x128xf32, #tpu.memory_space<vmem>>, vector<1x128xf32>,
    return
  }
  func.func @transform_0(%arg0: i32) -> (i32, i32) {
    %c0_i32 = arith.constant 0 : i32
    %c0_i32_0 = arith.constant 0 : i32
    %c0_i32_1 = arith.constant 0 : i32
    return %c0_i32, %c0_i32_0 : i32, i32
  }
  func.func @transform_1(%arg0: i32) -> (i32, i32) {
    %c0_i32 = arith.constant 0 : i32
    %c0_i32_0 = arith.constant 0 : i32
    %c0_i32_1 = arith.constant 0 : i32
    return %c0_i32, %c0_i32_0 : i32, i32
  }
  func.func @transform_2(%arg0: i32) -> (i32, i32) {
    %c0_i32 = arith.constant 0 : i32
    %c0_i32_0 = arith.constant 0 : i32
    %c0_i32_1 = arith.constant 0 : i32
    return %c0_i32, %c0_i32_0 : i32, i32
  }
  func.func @transform_3(%arg0: i32) -> (i32, i32) {
    %c0_i32 = arith.constant 0 : i32
    %c0_i32_0 = arith.constant 0 : i32
    return %arg0, %c0_i32 : i32, i32
  }
}

</mosaic_0001>

<llo_original>
// kernel: tpu_custom_call.1
$region0: #{tpu_custom_call.1}
  #allocation0 [shape = 'u32[]', space=smem, size = 0x4, offset = 0x4, fixed_abs, tag = 'smem constant byte address 0x4 - core index']
  #allocation1 [shape = 'u32[144,128]{1,0:T(1,128)}', space=vmem, size = 0x12000, scoped, tag = 'internal scratch']
  %s0 = inlined_call_operand.hbm [shape: f32[1,128], index: 0, kind: input, shape index: {}]
  %s1 = inlined_call_operand.vmem [shape: f32[1,128], index: 1, kind: input, shape index: {}]
  %s2 = inlined_call_operand.vmem [shape: f32[1,128], index: 2, kind: input, shape index: {}]
  %s3 = inlined_call_operand.hbm [shape: f32[1,128], index: 3, kind: output, shape index: {}]
  %s4 = sld [smem:[#allocation0]]
  $region26: #{tpu_custom_call.1} parent=0
    _
  %s6 = ssub.s32 1, %s4
  %s7 = scalar_select 0, %s6, %s4
  $region1: #{tpu_custom_call.1} parent=0
    #allocation2 [shape = 'u8[512]{0}', space=vmem, size = 0x400, scoped, tag = 'input window, operand 0, single buffered']
    #allocation3 [shape = 's32[1]{0}', space=sflag, size = 0x4, scoped, tag = 'scoped memory for tpu_custom_call.1']
    #allocation4 [shape = 's32[1]{0}', space=sflag, size = 0x4, scoped, tag = 'scoped memory for tpu_custom_call.1']
    #allocation5 [shape = 'u8[512]{0}', space=vmem, size = 0x400, scoped, tag = 'output window, operand 0, single buffered']
    %8 = vsyncpa [#allocation3], 0
    %9 = vsyncpa [#allocation4], 0
    // Predicated region
    $region2: #{tpu_custom_call.1} parent=1 // pred_check
      _
    $region3: #{tpu_custom_call.1} parent=1 // pred_check_branch
      %11 = sbr.rel (0) target = $region5
    $region4: #{tpu_custom_call.1} parent=1 // pred_region
      %s13 = ssub.s32 16, 16
      %14 = vsyncadd [#allocation3], %s13
      %s16 = sshll.u32 [#allocation2], 4
      %s17 = int_to_ptr.vmem [resolvable:$true] %s16
      %19 = dma.hbm_to_vmem [thread:$0]  %s0, 16, %s17, [#allocation3]
    $region5: #{tpu_custom_call.1} parent=1 // pred_fallthru
      _
    // Predicated region
    $region6: #{tpu_custom_call.1} parent=1 // pred_check
      _
    $region7: #{tpu_custom_call.1} parent=1 // pred_check_branch
      %21 = sbr.rel (0) target = $region9
    $region8: #{tpu_custom_call.1} parent=1 // pred_region
      _
    $region9: #{tpu_custom_call.1} parent=1 // pred_fallthru
      _
    // Predicated region
    $region10: #{tpu_custom_call.1} parent=1 // pred_check
      _
    $region11: #{tpu_custom_call.1} parent=1 // pred_check_branch
      %23 = sbr.rel (0) target = $region13
    $region12: #{tpu_custom_call.1} parent=1 // pred_region
      _
    $region13: #{tpu_custom_call.1} parent=1 // pred_fallthru
      _
    // Predicated region
    $region14: #{tpu_custom_call.1} parent=1 // pred_check
      _
    $region15: #{tpu_custom_call.1} parent=1 // pred_check_branch
      %25 = sbr.rel (0) target = $region17
    $region16: #{tpu_custom_call.1} parent=1 // pred_region
      %26 = dma.done [#allocation3], 16
    $region17: #{tpu_custom_call.1} parent=1 // pred_fallthru
      _
    %v27 = vlaneseq
    %v28 = vshrl.u32 %v27, 7
    %v29 = vstv 0
    %v30 = vadd.s32 %v28, %v29
    %v31 = vcvt.s32.f32 %v30
    %v32 = vmul.f32 %v31, 16.0
    %v33 = vld [vmem:[%s2] sm:$0x1]
    %v34 = vadd.f32 %v32, %v33
    %v35 = vld [vmem:[#allocation2] sm:$0x1]
    %v36 = vmul.f32 %v34, %v35
    %v37 = vld [vmem:[%s1] sm:$0x1]
    %v38 = vadd.f32 %v36, %v37
    %v39 = vand.u32 2147483647, %v38
    %vm40 = vcmp.le.f32.partialorder %v39, 0.7853982
    %vm41 = vcmp.lt.s32.totalorder %v38, 0
    %v42 = vand.u32 %v38, 2139095040
    %v43 = vshrl.u32 %v42, 23
    %v44 = vsub.s32 %v43, 127
    %v45 = vand.u32 2147483647, %v38
    %v46 = vand.u32 %v45, 8388607
    %v47 = vor.u32 %v46, 8388608
    %v48 = vsub.s32 0, %v47
    %v49 = vadd.s32 %v44, 1
    %vm50 = vcmp.gt.s32.totalorder %v49, 0
    %v51 = vsel %vm50, %v49, 0
    %v52 = vshrl.u32 %v51, 5
    %v53 = vand.u32 %v51, 31
    %v54 = vsub.s32 32, %v53
    %v55 = vshrl.u32 683565275, %v54
    %v56 = vshll.u32 683565275, %v53
    %v57 = vshrl.u32 2475754826, %v54
    %v58 = vor.u32 %v56, %v57
    %v59 = vshll.u32 2475754826, %v53
    %v60 = vshrl.u32 2131351028, %v54
    %v61 = vor.u32 %v59, %v60
    %v62 = vshll.u32 2131351028, %v53
    %v63 = vshrl.u32 2102212464, %v54
    %v64 = vor.u32 %v62, %v63
    %v65 = vshll.u32 2102212464, %v53
    %v66 = vshrl.u32 920167782, %v54
    %v67 = vor.u32 %v65, %v66
    %v68 = vshll.u32 920167782, %v53
    %v69 = vshrl.u32 1326507024, %v54
    %v70 = vor.u32 %v68, %v69
    %vm71 = vcmp.lt.s32.totalorder %v52, 1
    %vm72 = vcmp.lt.s32.totalorder %v52, 2
    %vm73 = vcmp.lt.s32.totalorder %v52, 3
    %vm74 = vcmp.lt.s32.totalorder %v52, 4
    %v75 = vsel %vm71, %v55, %v58
    %v76 = vsel %vm74, %v64, 2102212464
    %v77 = vsel %vm73, %v61, %v76
    %v78 = vsel %vm72, %v75, %v77
    %v79 = vsel %vm71, %v58, %v61
    %v80 = vsel %vm74, %v67, 920167782
    %v81 = vsel %vm73, %v64, %v80
    %v82 = vsel %vm72, %v79, %v81
    %v83 = vsel %vm71, %v61, %v64
    %v84 = vsel %vm74, %v70, 1326507024
    %v85 = vsel %vm73, %v67, %v84
    %v86 = vsel %vm72, %v83, %v85
    %v87 = vshll.u32 %v47, 8
    %v88 = vmul.u32.u64.compose %v87, %v86
    %v89 = vextract.low.u32 %v88
    %v90 = vextract.high.u32 %v88
    %v91 = vmul.u32.u64.compose %v87, %v82
    %v92 = vextract.low.u32 %v91
    %v93 = vextract.high.u32 %v91
    %v94 = vmul.u32 %v87, %v78
    %v95 = vadd.s32 %v90, %v92
    %vm96 = vc.u32 %v90, %v92
    %v97 = vadd.s32 %v93, 1
    %v98 = vsel %vm96, %v97, %v93
    %v99 = vadd.s32 %v94, %v98
    %v100 = vadd.s32 %v99, 536870912
    %v101 = vshrl.u32 %v100, 30
    %v102 = vshll.u32 %v101, 30
    %v103 = vsub.s32 %v99, %v102
    %vm104 = vcmp.lt.s32.totalorder %v103, 0
    %v105 = vsub.s32 0, %v103
    %v106 = vsel %vm104, %v105, %v103
    %v107 = vclz %v106
    %v108 = vsub.s32 %v107, 2
    %vm109 = vcmp.gt.s32.totalorder 0, %v108
    %v110 = vsel %vm109, 0, %v108
    %v111 = vsub.s32 32, %v110
    %v112 = vshll.u32 %v103, %v110
    %v113 = vshrl.u32 %v95, %v111
    %v114 = vor.u32 %v112, %v113
    %v115 = vsub.s32 4294967266, %v110
    %v116 = vadd.s32 %v115, 127
    %v117 = vshll.u32 %v116, 23
    %v118 = vor.u32 4788187, %v117
    %v119 = vand.u32 2147483647, %v118
    %v121 = vcvt.s32.f32 %v114
    %v122 = vmul.f32 %v121, %v119
    %v123 = vxor.u32 %v122, 2147483648
    %v124 = vsel %vm41, %v123, %v122
    %v125 = vsub.s32 4, %v101
    %v126 = vsel %vm41, %v125, %v101
    %v127 = vsel %vm40, %v38, %v124
    %v128 = vsel %vm40, 0, %v126
    %v129 = vcosq.f32.pop %v127
    %v130 = vsinq.f32.pop %v127
    %vm131 = vweird.f32 %v38
    %v132 = vadd.s32 %v128, 3
    %v133 = vand.u32 %v132, 3
    %vm134 = vcmp.lt.s32.totalorder %v133, 2
    %vm135 = vcmp.eq.s32.totalorder %v133, 0
    %v136 = vxor.u32 %v130, 2147483648
    %v137 = vsel %vm135, %v129, %v136
    %vm138 = vcmp.eq.s32.totalorder %v133, 2
    %v139 = vxor.u32 %v129, 2147483648
    %v140 = vsel %vm138, %v139, %v130
    %v141 = vsel %vm134, %v137, %v140
    %v142 = vsel %vm131, nan, %v141
    %143 = vst [vmem:[#allocation5] sm:$0x1] %v142
    // Predicated region
    $region18: #{tpu_custom_call.1} parent=1 // pred_check
      _
    $region19: #{tpu_custom_call.1} parent=1 // pred_check_branch
      %145 = sbr.rel (0) target = $region21
    $region20: #{tpu_custom_call.1} parent=1 // pred_region
      %s147 = ssub.s32 16, 16
      %148 = vsyncadd [#allocation4], %s147
      %s150 = sshll.u32 [#allocation5], 4
      %s151 = int_to_ptr.vmem [resolvable:$true] %s150
      %153 = dma.vmem_to_hbm [thread:$0]  %s151, 16, %s3, [#allocation4]
    $region21: #{tpu_custom_call.1} parent=1 // pred_fallthru
      _
    // Predicated region
    $region22: #{tpu_custom_call.1} parent=1 // pred_check
      _
    $region23: #{tpu_custom_call.1} parent=1 // pred_check_branch
      %155 = sbr.rel (0) target = $region25
    $region24: #{tpu_custom_call.1} parent=1 // pred_region
      %156 = dma.done [#allocation4], 16
    $region25: #{tpu_custom_call.1} parent=1 // pred_fallthru
      _
    %157 = vsyncpa [#allocation3], 1
    %158 = vsyncpa [#allocation4], 1

</llo_original>
